<compile_context>
chip_gen: v5e
topology: v5e:2x2
jax: 0.10.0
libtpu: 0.0.40
codegen_flags: <defaults>
</compile_context>

<pallas_src>
import jax
import jax.numpy as jnp
import numpy as np
from jax.experimental import pallas as pl
from jax.experimental.pallas import tpu as pltpu


def gmm_forward_kernel(a_ref, g_ref, w_ref, o_ref):
    # One VPU multiply to gate the LHS, one MXU push to produce the output.
    lhs = g_ref[...] * a_ref[...]                             # (TB, K*N + K)
    o_ref[...] = jnp.dot(lhs, w_ref[...],
                         preferred_element_type=jnp.float32)  # (TB, n_z)


def gmm_forward(z, L_stack, m_stack, masks, *, batch_tile=None):
    """z: (B, n_z); L_stack: (K, n_z, n_z); m_stack: (K, 1, n_z); masks: (B, K)."""
    B, N = z.shape
    K = L_stack.shape[0]
    D = K * N + K                                  # augmented contraction depth

    z = z.astype(jnp.float32)
    masks = masks.astype(jnp.float32)

    # ---- wrapper-side layout plumbing (no compute hoisting) ----------------
    # W_full rows: [L_0^T ; ... ; L_{K-1}^T ; M]  ->  (K*N + K, N)
    Wg = jnp.transpose(L_stack, (0, 2, 1)).reshape(K * N, N).astype(jnp.float32)
    M = m_stack.reshape(K, N).astype(jnp.float32)
    W_full = jnp.concatenate([Wg, M], axis=0)                       # (D, N)

    # A = [z z ... z | 1],  G = [masks broadcast over n_z | masks]
    A = jnp.concatenate([jnp.tile(z, (1, K)),
                         jnp.ones((B, K), jnp.float32)], axis=1)    # (B, D)
    G = jnp.concatenate([jnp.repeat(masks, N, axis=1), masks], axis=1)  # (B, D)

    # ---- batch tiling: grow sublane (row) direction, never pad the lanes ---
    if batch_tile is None:
        batch_tile = min(256, -(-B // 8) * 8)      # sublane-aligned, <=256 rows
    TB = batch_tile
    B_pad = -(-B // TB) * TB
    if B_pad != B:
        pad = ((0, B_pad - B), (0, 0))
        A = jnp.pad(A, pad)
        G = jnp.pad(G, pad)

    out = pl.pallas_call(
        gmm_forward_kernel,
        out_shape=jax.ShapeDtypeStruct((B_pad, N), jnp.float32),
        grid=(B_pad // TB,),
        in_specs=[
            pl.BlockSpec((TB, D), lambda b: (b, 0)),   # A  (batch-tiled)
            pl.BlockSpec((TB, D), lambda b: (b, 0)),   # G  (batch-tiled)
            pl.BlockSpec((D, N), lambda b: (0, 0)),    # W_full (resident weights)
        ],
        out_specs=pl.BlockSpec((TB, N), lambda b: (b, 0)),
        compiler_params=pltpu.CompilerParams(
            dimension_semantics=("parallel",)),        # v7x: split batch over TCs
    )(A, G, W_full)
    return out[:B]


def sample_components_onehot(key, mixing_weight_logits, n):
    """Forward value of F.gumbel_softmax(logits[None].repeat(n,1), hard=True)."""
    # TODO(synk): gumbel-softmax sampling (randomness) is host/JAX glue, not kernel work.
    k = mixing_weight_logits.shape[0]
    g = jax.random.gumbel(key, (n, k), dtype=jnp.float32)
    idx = jnp.argmax(mixing_weight_logits[None, :] + g, axis=-1)
    return jax.nn.one_hot(idx, k, dtype=jnp.float32)


if __name__ == "__main__":
    n_z = 32
    n_components = 4
    batch = 8

    root = jax.random.PRNGKey(0)
    k_m, k_z, k_gumbel = jax.random.split(root, 3)

    # Deterministic parameter init matching the module's __init__:
    #   mvn_k.m ~ randn (1, n_z); mvn_k.L = eye(n_z); mixing_weight_logits = zeros(K)
    m_stack = jax.random.normal(k_m, (n_components, 1, n_z), dtype=jnp.float32)
    L_stack = jnp.tile(jnp.eye(n_z, dtype=jnp.float32)[None], (n_components, 1, 1))
    mixing_weight_logits = jnp.zeros((n_components,), dtype=jnp.float32)

    # Input z ~ randn (bs, n_z)
    z = jax.random.normal(k_z, (batch, n_z), dtype=jnp.float32)

    # Hard gumbel-softmax component selection (one-hot masks).
    masks = sample_components_onehot(k_gumbel, mixing_weight_logits, batch)  # (B, K)

    out = gmm_forward(z, L_stack, m_stack, masks)
    out = jax.block_until_ready(out)

    # Pure-JAX reference for the same forward semantics.
    samps = m_stack + jnp.einsum("bn,kmn->kbm", z, L_stack)   # (K, B, n_z)
    ref = jnp.sum(masks.T[..., None] * samps, axis=0)         # (B, n_z)
    assert np.allclose(np.asarray(out), np.asarray(ref), rtol=1e-5, atol=1e-5)

    print("KERNEL_OK")
</pallas_src>

<mosaic_0001>
module attributes {stable_mosaic.version = 11 : i64} {
  func.func @gmm_forward_kernel(%arg0: i32, %arg1: memref<8x132xf32, #tpu.memory_space<vmem>>, %arg2: memref<8x132xf32, #tpu.memory_space<vmem>>, %arg3: memref<132x32xf32, #tpu.memory_space<vmem>>, %arg4: memref<8x32xf32, #tpu.memory_space<vmem>>) attributes {dimension_semantics = [#tpu.dimension_semantics<parallel>], iteration_bounds = array<i64: 1>, scalar_prefetch = 0 : i64, scratch_operands = 0 : i64, tpu.core_type = #tpu.core_type<tc>, window_params = [{transform_indices = @transform_0, window_bounds = array<i64: 8, 132>}, {transform_indices = @transform_1, window_bounds = array<i64: 8, 132>}, {pipeline_mode = #tpu.pipeline_mode<synchronous>, transform_indices = @transform_2, window_bounds = array<i64: 132, 32>}, {transform_indices = @transform_3, window_bounds = array<i64: 8, 32>}]} {
    %c0 = arith.constant 0 : index
    %c0_0 = arith.constant 0 : index
    %0 = vector.load %arg2[%c0, %c0_0] : memref<8x132xf32, #tpu.memory_space<vmem>>, vector<8x132xf32>
    %c0_1 = arith.constant 0 : index
    %c0_2 = arith.constant 0 : index
    %1 = vector.load %arg1[%c0_1, %c0_2] : memref<8x132xf32, #tpu.memory_space<vmem>>, vector<8x132xf32>
    %2 = arith.mulf %0, %1 : vector<8x132xf32>
    %c0_3 = arith.constant 0 : index
    %c0_4 = arith.constant 0 : index
    %3 = vector.load %arg3[%c0_3, %c0_4] : memref<132x32xf32, #tpu.memory_space<vmem>>, vector<132x32xf32>
    %cst = arith.constant dense<0.000000e+00> : vector<8x32xf32>
    %4 = tpu.matmul %2, %3, %cst {dimension_numbers = #tpu.dot_dimension_numbers<[1], [0], [0], [1], [0, 0, 1, 1], [], []>} : vector<8x132xf32>, vector<132x32xf32>, vector<8x32xf32> -> vector<8x32xf32>
    %c0_5 = arith.constant 0 : index
    %c0_6 = arith.constant 0 : index
    %5 = vector.load %arg4[%c0_5, %c0_6] : memref<8x32xf32, #tpu.memory_space<vmem>>, vector<8x32xf32>
    tpu.vector_store %arg4[%c0_5, %c0_6], %4 {strides = array<i32>} : memref<8x32xf32, #tpu.memory_space<vmem>>, vector<8x32xf32>,
    return
  }
  func.func @transform_0(%arg0: i32) -> (i32, i32) {
    %c0_i32 = arith.constant 0 : i32
    %c0_i32_0 = arith.constant 0 : i32
    return %arg0, %c0_i32 : i32, i32
  }
  func.func @transform_1(%arg0: i32) -> (i32, i32) {
    %c0_i32 = arith.constant 0 : i32
    %c0_i32_0 = arith.constant 0 : i32
    return %arg0, %c0_i32 : i32, i32
  }
  func.func @transform_2(%arg0: i32) -> (i32, i32) {
    %c0_i32 = arith.constant 0 : i32
    %c0_i32_0 = arith.constant 0 : i32
    %c0_i32_1 = arith.constant 0 : i32
    return %c0_i32, %c0_i32_0 : i32, i32
  }
  func.func @transform_3(%arg0: i32) -> (i32, i32) {
    %c0_i32 = arith.constant 0 : i32
    %c0_i32_0 = arith.constant 0 : i32
    return %arg0, %c0_i32 : i32, i32
  }
}

</mosaic_0001>

<llo_original>
// kernel: tpu_custom_call.1
$region0: #{tpu_custom_call.1}
  #allocation0 [shape = 'u32[]', space=smem, size = 0x4, offset = 0x4, fixed_abs, tag = 'smem constant byte address 0x4 - core index']
  #allocation1 [shape = 'u32[72,128]{1,0:T(1,128)}', space=vmem, size = 0x9000, scoped, tag = 'internal scratch']
  %s0 = inlined_call_operand.vmem [shape: f32[8,132], index: 0, kind: input, shape index: {}]
  %s1 = inlined_call_operand.vmem [shape: f32[8,132], index: 1, kind: input, shape index: {}]
  %s2 = inlined_call_operand.vmem [shape: f32[132,32], index: 2, kind: input, shape index: {}]
  %s3 = inlined_call_operand.hbm [shape: f32[8,32], index: 3, kind: output, shape index: {}]
  %s4 = sld [smem:[#allocation0]]
  $region22: #{tpu_custom_call.1} parent=0
    _
  %s6 = ssub.s32 1, %s4
  %s7 = scalar_select 0, %s6, %s4
  $region1: #{tpu_custom_call.1} parent=0
    #allocation2 [shape = 'u8[4096]{0}', space=vmem, size = 0x1000, scoped, tag = 'output window, operand 0, single buffered']
    #allocation3 [shape = 's32[1]{0}', space=sflag, size = 0x4, scoped, tag = 'scoped memory for tpu_custom_call.1']
    %8 = vsyncpa [#allocation3], 0
    // Predicated region
    $region2: #{tpu_custom_call.1} parent=1 // pred_check
      _
    $region3: #{tpu_custom_call.1} parent=1 // pred_check_branch
      %10 = sbr.rel (0) target = $region5
    $region4: #{tpu_custom_call.1} parent=1 // pred_region
      _
    $region5: #{tpu_custom_call.1} parent=1 // pred_fallthru
      _
    // Predicated region
    $region6: #{tpu_custom_call.1} parent=1 // pred_check
      _
    $region7: #{tpu_custom_call.1} parent=1 // pred_check_branch
      %12 = sbr.rel (0) target = $region9
    $region8: #{tpu_custom_call.1} parent=1 // pred_region
      _
    $region9: #{tpu_custom_call.1} parent=1 // pred_fallthru
      _
    // Predicated region
    $region10: #{tpu_custom_call.1} parent=1 // pred_check
      _
    $region11: #{tpu_custom_call.1} parent=1 // pred_check_branch
      %14 = sbr.rel (0) target = $region13
    $region12: #{tpu_custom_call.1} parent=1 // pred_region
      _
    $region13: #{tpu_custom_call.1} parent=1 // pred_fallthru
      _
    %v15 = vld [vmem:[%s1] sm:$0xff]
    %v16 = vld [vmem:[%s1 + $0x8] sm:$0xff]
    %v17 = vld [vmem:[%s0] sm:$0xff]
    %v18 = vld [vmem:[%s0 + $0x8] sm:$0xff]
    %v19 = vmul.f32 %v15, %v17
    %v20 = vmul.f32 %v16, %v18
    %v21 = vld [vmem:[%s2] sm:$0xff]
    %v22 = vld [vmem:[%s2 + $0x8] sm:$0xff]
    %v23 = vld [vmem:[%s2 + $0x10] sm:$0xff]
    %v24 = vld [vmem:[%s2 + $0x18] sm:$0xff]
    %v25 = vld [vmem:[%s2 + $0x20] sm:$0xff]
    %v26 = vld [vmem:[%s2 + $0x28] sm:$0xff]
    %v27 = vld [vmem:[%s2 + $0x30] sm:$0xff]
    %v28 = vld [vmem:[%s2 + $0x38] sm:$0xff]
    %v29 = vld [vmem:[%s2 + $0x40] sm:$0xff]
    %v30 = vld [vmem:[%s2 + $0x48] sm:$0xff]
    %v31 = vld [vmem:[%s2 + $0x50] sm:$0xff]
    %v32 = vld [vmem:[%s2 + $0x58] sm:$0xff]
    %v33 = vld [vmem:[%s2 + $0x60] sm:$0xff]
    %v34 = vld [vmem:[%s2 + $0x68] sm:$0xff]
    %v35 = vld [vmem:[%s2 + $0x70] sm:$0xff]
    %v36 = vld [vmem:[%s2 + $0x78] sm:$0xff]
    %v37 = vld [vmem:[%s2 + $0x80] sm:$0xf]
    %vm38 = vcmask 31744
    %v40 = vsel %vm38, %v20, 0
    %vm42 = vcmask 1043456
    %v44 = vsel %vm42, %v37, 0
    %46 = vmatpush.msra.mxu0 %v36
    %47 = vmatpush.msra.mxu0 %v35
    %48 = vmatpush.msra.mxu0 %v34
    %49 = vmatpush.msra.mxu0 %v33
    %50 = vmatpush.msra.mxu0 %v32
    %51 = vmatpush.msra.mxu0 %v31
    %52 = vmatpush.msra.mxu0 %v30
    %53 = vmatpush.msra.mxu0 %v29
    %54 = vmatpush.msra.mxu0 %v28
    %55 = vmatpush.msra.mxu0 %v27
    %56 = vmatpush.msra.mxu0 %v26
    %57 = vmatpush.msra.mxu0 %v25
    %58 = vmatpush.msra.mxu0 %v24
    %59 = vmatpush.msra.mxu0 %v23
    %60 = vmatpush.msra.mxu0 %v22
    %61 = vmatpush.msra.mxu0 %v21
    %62 = vmatmul.f32.gmra.mxu0 %v19
    %v63 = vpop.f32.mrf.mxu0
    %v64 = vadd.f32 0.0, %v63
    %65 = vdwg.mxu0
    %66 = vmatpush.msra.mxu0 0.0
    %67 = vmatpush.msra.mxu0 0.0
    %68 = vmatpush.msra.mxu0 0.0
    %69 = vmatpush.msra.mxu0 0.0
    %70 = vmatpush.msra.mxu0 0.0
    %71 = vmatpush.msra.mxu0 0.0
    %72 = vmatpush.msra.mxu0 0.0
    %73 = vmatpush.msra.mxu0 0.0
    %74 = vmatpush.msra.mxu0 0.0
    %75 = vmatpush.msra.mxu0 0.0
    %76 = vmatpush.msra.mxu0 0.0
    %77 = vmatpush.msra.mxu0 0.0
    %78 = vmatpush.msra.mxu0 0.0
    %79 = vmatpush.msra.mxu0 0.0
    %80 = vmatpush.msra.mxu0 0.0
    %81 = vmatpush.msra.mxu0 %v44
    %82 = vmatmul.f32.gmra.mxu0 %v40
    %v83 = vpop.f32.mrf.mxu0
    %v84 = vadd.f32 %v64, %v83
    %85 = vdwg.mxu0
    %vm86 = vcmask 261120
    %87 = vst.msk [vmem:[#allocation2] sm:$0xff] %vm86, %v84
    // Predicated region
    $region14: #{tpu_custom_call.1} parent=1 // pred_check
      _
    $region15: #{tpu_custom_call.1} parent=1 // pred_check_branch
      %89 = sbr.rel (0) target = $region17
    $region16: #{tpu_custom_call.1} parent=1 // pred_region
      %91 = vsyncadd [#allocation3], 0
      %s93 = sshll.u32 [#allocation2], 4
      %s94 = int_to_ptr.vmem [resolvable:$true] %s93
      %s95 = sshll.u32 %s3, 4
      %s96 = int_to_ptr.hbm [resolvable:$true] %s95
      %98 = dma.vmem_to_hbm [thread:$0]  %s94, 128, %s96, [#allocation3]
    $region17: #{tpu_custom_call.1} parent=1 // pred_fallthru
      _
    // Predicated region
    $region18: #{tpu_custom_call.1} parent=1 // pred_check
      _
    $region19: #{tpu_custom_call.1} parent=1 // pred_check_branch
      %100 = sbr.rel (0) target = $region21
    $region20: #{tpu_custom_call.1} parent=1 // pred_region
      %102 = dma.done [#allocation3], 128
    $region21: #{tpu_custom_call.1} parent=1 // pred_fallthru
      _
    %103 = vsyncpa [#allocation3], 1

</llo_original>
